<compile_context>
chip_gen: v5e
topology: v5e:2x2
jax: 0.10.0
libtpu: 0.0.40
codegen_flags: <defaults>
</compile_context>

<pallas_src>
import functools
import math

import jax
import jax.numpy as jnp
from jax.experimental import pallas as pl
from jax.experimental.pallas import tpu as pltpu


# ---------------------------------------------------------------------------
# Tile helpers
# ---------------------------------------------------------------------------
def _pick_divisor_tile(dim, target, align):
    """Largest tile <= target that is a multiple of `align` and divides `dim`;
    falls back to the full dimension (always a legal block extent)."""
    if dim <= target:
        return dim
    t = (target // align) * align
    while t >= align:
        if dim % t == 0:
            return t
        t -= align
    return dim


def _pick_row_tile(dim, target, align):
    """Row (M) tile: aligned tile <= target; a partial last tile is handled by
    a cdiv grid (out-of-bounds rows are masked on store)."""
    if dim <= target:
        return dim
    return max(align, (target // align) * align)


def _pick_head_block(num_heads, d_k):
    """Heads processed per attention grid step.

    d_k % 128 == 0 -> one head per step (lane-dense, no in-kernel transposes).
    Otherwise      -> smallest head block with Hc*d_k % 128 == 0 (lane-dense
                      DMA / unmasked stores); fall back to all heads (full-D
                      block is always a legal lane extent).
    """
    if d_k % 128 == 0:
        return 1
    for hc in range(1, num_heads + 1):
        if num_heads % hc == 0 and (hc * d_k) % 128 == 0:
            return hc
    return num_heads


# ---------------------------------------------------------------------------
# Tiled linear (x @ W + b) kernel
# ---------------------------------------------------------------------------
def _linear_kernel(x_ref, w_ref, b_ref, o_ref, acc_ref):
    @pl.when(pl.program_id(2) == 0)
    def _init():
        acc_ref[...] = jnp.zeros_like(acc_ref)

    acc_ref[...] += jnp.dot(x_ref[...], w_ref[...],
                            preferred_element_type=jnp.float32)

    @pl.when(pl.program_id(2) == pl.num_programs(2) - 1)
    def _finalize():
        o_ref[...] = (acc_ref[...] + b_ref[...]).astype(o_ref.dtype)


def _pallas_linear(x, w, b, *, out_dtype, tm_t=512, tn_t=512, tk_t=512):
    """x: (M, K) @ w: (K, N) + b: (N,) -> (M, N) in out_dtype; f32 accumulation."""
    M, K = x.shape
    _, N = w.shape
    m_align = 16 if x.dtype == jnp.bfloat16 else 8
    tm = _pick_row_tile(M, tm_t, m_align)
    tn = _pick_divisor_tile(N, tn_t, 128)
    tk = _pick_divisor_tile(K, tk_t, 128)     # must divide K (reduction axis)
    grid = (pl.cdiv(M, tm), N // tn, K // tk)
    return pl.pallas_call(
        _linear_kernel,
        out_shape=jax.ShapeDtypeStruct((M, N), out_dtype),
        grid=grid,
        in_specs=[
            pl.BlockSpec((tm, tk), lambda i, j, k: (i, k)),
            pl.BlockSpec((tk, tn), lambda i, j, k: (k, j)),
            pl.BlockSpec((1, tn), lambda i, j, k: (0, j)),
        ],
        out_specs=pl.BlockSpec((tm, tn), lambda i, j, k: (i, j)),
        scratch_shapes=[pltpu.VMEM((tm, tn), jnp.float32)],
        compiler_params=pltpu.CompilerParams(
            dimension_semantics=("parallel", "parallel", "arbitrary")),
    )(x, w, b.astype(jnp.float32).reshape(1, N))


# ---------------------------------------------------------------------------
# Flash-style scaled-dot-product attention kernel (online softmax over KV)
# ---------------------------------------------------------------------------
def _flash_attention_kernel(head_block, d_k, approx_recip,
                            q_ref, k_ref, v_ref, o_ref, m_sc, l_sc, acc_sc):
    ki = pl.program_id(3)

    @pl.when(ki == 0)
    def _init():
        m_sc[...] = jnp.full(m_sc.shape, -jnp.inf, m_sc.dtype)
        l_sc[...] = jnp.zeros(l_sc.shape, l_sc.dtype)
        acc_sc[...] = jnp.zeros(acc_sc.shape, acc_sc.dtype)

    tq = q_ref.shape[1]
    tkv = k_ref.shape[1]

    # Scale 1/sqrt(d_k) is already folded into W_q / b_q at prepare time.
    if head_block == 1:
        q = q_ref[0]                                     # (tq, d_k)
        k = k_ref[0]                                     # (tkv, d_k)
        v = v_ref[0]
        s = jnp.einsum('qd,kd->qk', q, k,
                       preferred_element_type=jnp.float32)      # (tq, tkv)
    else:
        # Small d_k: a block of heads per step; relayout happens on VMEM tiles.
        q = jnp.transpose(q_ref[0].reshape(tq, head_block, d_k), (1, 0, 2))
        k = jnp.transpose(k_ref[0].reshape(tkv, head_block, d_k), (1, 0, 2))
        v = jnp.transpose(v_ref[0].reshape(tkv, head_block, d_k), (1, 0, 2))
        s = jnp.einsum('hqd,hkd->hqk', q, k,
                       preferred_element_type=jnp.float32)      # (hb, tq, tkv)

    m_prev = m_sc[...]
    m_new = jnp.maximum(m_prev, jnp.max(s, axis=-1, keepdims=True))
    alpha = jnp.exp(m_prev - m_new)
    p = jnp.exp(s - m_new)                               # f32 softmax numerator
    l_sc[...] = alpha * l_sc[...] + jnp.sum(p, axis=-1, keepdims=True)

    if head_block == 1:
        pv = jnp.einsum('qk,kd->qd', p.astype(v.dtype), v,
                        preferred_element_type=jnp.float32)
    else:
        pv = jnp.einsum('hqk,hkd->hqd', p.astype(v.dtype), v,
                        preferred_element_type=jnp.float32)
    acc_sc[...] = alpha * acc_sc[...] + pv
    m_sc[...] = m_new

    @pl.when(ki == pl.num_programs(3) - 1)
    def _finalize():
        # Post-matmul normalization: divide the (tq, d_k)-sized accumulator,
        # not the (tq, tkv) probability tile.
        o = acc_sc[...] * pl.reciprocal(l_sc[...], approx=approx_recip)
        if head_block != 1:
            o = jnp.transpose(o, (1, 0, 2)).reshape(tq, head_block * d_k)
        o_ref[0] = o.astype(o_ref.dtype)


def _pallas_flash_attention(q_arr, k_arr, v_arr, *, num_heads, d_k, head_block,
                            col_offsets, out_dtype, approx_recip):
    """q/k/v arrays: (B, S, D) or the packed (B, S, 3D) QKV slab (with
    col_offsets selecting the Q/K/V column sections) -> (B, Sq, D)."""
    B, Sq, _ = q_arr.shape
    _, Skv, _ = k_arr.shape
    D = num_heads * d_k
    hd = head_block * d_k
    n_hb = num_heads // head_block

    # Query / KV tiles; keep the (head_block, tq, tkv) f32 score tile ~<=2 MiB.
    tq_t = 256
    tkv_t = int(min(512, max(128, (2 << 20) // (4 * head_block * tq_t))))
    tq = _pick_divisor_tile(Sq, tq_t, 8)
    tkv = _pick_divisor_tile(Skv, tkv_t, 8)

    qo, ko, vo = col_offsets
    grid = (B, n_hb, Sq // tq, Skv // tkv)

    if head_block == 1:
        scratch = [pltpu.VMEM((tq, 1), jnp.float32),
                   pltpu.VMEM((tq, 1), jnp.float32),
                   pltpu.VMEM((tq, d_k), jnp.float32)]
    else:
        scratch = [pltpu.VMEM((head_block, tq, 1), jnp.float32),
                   pltpu.VMEM((head_block, tq, 1), jnp.float32),
                   pltpu.VMEM((head_block, tq, d_k), jnp.float32)]

    kernel = functools.partial(_flash_attention_kernel, head_block, d_k,
                               approx_recip)
    return pl.pallas_call(
        kernel,
        out_shape=jax.ShapeDtypeStruct((B, Sq, D), out_dtype),
        grid=grid,
        in_specs=[
            pl.BlockSpec((1, tq, hd),
                         lambda b, h, qi, ki, _o=qo: (b, qi, h + _o)),
            pl.BlockSpec((1, tkv, hd),
                         lambda b, h, qi, ki, _o=ko: (b, ki, h + _o)),
            pl.BlockSpec((1, tkv, hd),
                         lambda b, h, qi, ki, _o=vo: (b, ki, h + _o)),
        ],
        out_specs=pl.BlockSpec((1, tq, hd),
                               lambda b, h, qi, ki: (b, qi, h)),
        scratch_shapes=scratch,
        compiler_params=pltpu.CompilerParams(
            dimension_semantics=("parallel", "parallel", "parallel",
                                 "arbitrary")),
    )(q_arr, k_arr, v_arr)


# ---------------------------------------------------------------------------
# Parameter preparation (one-time, outside the forward)
# ---------------------------------------------------------------------------
def prepare_params(params, num_heads, mxu_dtype=jnp.bfloat16):
    """Fuse W_q|W_k|W_v, fold 1/sqrt(d_k) into W_q/b_q, pre-cast weights to the
    MXU operand dtype.  Call once; avoids per-forward concat/cast HBM traffic."""
    d_model = params["wq"].shape[0]
    assert d_model % num_heads == 0, "d_model must be divisible by num_heads"
    d_k = d_model // num_heads
    scale = 1.0 / math.sqrt(d_k)
    wq = params["wq"] * scale
    bq = params["bq"] * scale
    f32 = jnp.float32
    return {
        "d_model": d_model, "num_heads": num_heads, "d_k": d_k,
        "mxu_dtype": mxu_dtype,
        "wq": wq.astype(mxu_dtype), "bq": bq.astype(f32),
        "wk": params["wk"].astype(mxu_dtype), "bk": params["bk"].astype(f32),
        "wv": params["wv"].astype(mxu_dtype), "bv": params["bv"].astype(f32),
        "wo": params["wo"].astype(mxu_dtype), "bo": params["bo"].astype(f32),
        "w_qkv": jnp.concatenate([wq, params["wk"], params["wv"]],
                                 axis=1).astype(mxu_dtype),
        "b_qkv": jnp.concatenate([bq, params["bk"],
                                  params["bv"]]).astype(f32),
    }


# ---------------------------------------------------------------------------
# MultiHeadAttention forward (mask=None path of the PyTorch module)
# ---------------------------------------------------------------------------
def multi_head_attention(Q, K, V, prepped):
    nh = prepped["num_heads"]
    d_k = prepped["d_k"]
    md = prepped["mxu_dtype"]
    act = md                               # activation dtype between kernels
    B, Sq, D = Q.shape
    _, Skv, _ = K.shape

    head_block = _pick_head_block(nh, d_k)
    hd = head_block * d_k
    n_hb = nh // head_block
    approx_recip = (md == jnp.bfloat16)

    self_attn = (Q is K) and (K is V)
    if self_attn and hd % 128 == 0:
        # Fused QKV projection; attention reads Q/K/V straight from the packed
        # (B, S, 3D) slab via column-block index maps (no reshape/stack/slice).
        xq = Q.reshape(B * Sq, D).astype(md)
        qkv = _pallas_linear(xq, prepped["w_qkv"], prepped["b_qkv"],
                             out_dtype=act).reshape(B, Sq, 3 * D)
        qp = kp = vp = qkv
        col_offsets = (0, n_hb, 2 * n_hb)
    else:
        # General (cross-attention / tiny-model) path: three projections,
        # no HBM-level stacking of the results.
        xq = Q.reshape(B * Sq, D).astype(md)
        xk = K.reshape(B * Skv, D).astype(md)
        xv = V.reshape(B * Skv, D).astype(md)
        qp = _pallas_linear(xq, prepped["wq"], prepped["bq"],
                            out_dtype=act).reshape(B, Sq, D)
        kp = _pallas_linear(xk, prepped["wk"], prepped["bk"],
                            out_dtype=act).reshape(B, Skv, D)
        vp = _pallas_linear(xv, prepped["wv"], prepped["bv"],
                            out_dtype=act).reshape(B, Skv, D)
        col_offsets = (0, 0, 0)

    attn = _pallas_flash_attention(
        qp, kp, vp, num_heads=nh, d_k=d_k, head_block=head_block,
        col_offsets=col_offsets, out_dtype=act, approx_recip=approx_recip)

    out = _pallas_linear(attn.reshape(B * Sq, D), prepped["wo"], prepped["bo"],
                         out_dtype=jnp.float32)
    return out.reshape(B, Sq, D)


# ---------------------------------------------------------------------------
# Pure-JAX reference (for correctness checks)
# ---------------------------------------------------------------------------
def reference_mha(Q, K, V, params, num_heads):
    B, Sq, D = Q.shape
    d_k = D // num_heads

    def lin(x, w, b):
        return x @ w + b

    def split(x):
        b, s, _ = x.shape
        return jnp.transpose(x.reshape(b, s, num_heads, d_k), (0, 2, 1, 3))

    q = split(lin(Q, params["wq"], params["bq"]))
    k = split(lin(K, params["wk"], params["bk"]))
    v = split(lin(V, params["wv"], params["bv"]))
    s = jnp.einsum("bhqd,bhkd->bhqk", q, k) / math.sqrt(d_k)
    p = jax.nn.softmax(s, axis=-1)
    o = jnp.einsum("bhqk,bhkd->bhqd", p, v)
    o = jnp.transpose(o, (0, 2, 1, 3)).reshape(B, Sq, D)
    return lin(o, params["wo"], params["bo"])


# ---------------------------------------------------------------------------
# Deterministic parameter init (PyTorch nn.Linear-style uniform bounds)
# ---------------------------------------------------------------------------
def init_params(key, d_model):
    bound = 1.0 / math.sqrt(d_model)
    params = {}
    for name in ("q", "k", "v", "o"):
        key, kw, kb = jax.random.split(key, 3)
        params["w" + name] = jax.random.uniform(
            kw, (d_model, d_model), jnp.float32, -bound, bound)
        params["b" + name] = jax.random.uniform(
            kb, (d_model,), jnp.float32, -bound, bound)
    return params


if __name__ == "__main__":
    key = jax.random.PRNGKey(0)

    # --- Config A: tiny model, head width < 128 (head-blocked path) --------
    d_model, num_heads, batch, seq = 32, 4, 2, 8
    key, kp, kq, kk, kv = jax.random.split(key, 5)
    params = init_params(kp, d_model)
    Q = jax.random.normal(kq, (batch, seq, d_model), jnp.float32)
    K = jax.random.normal(kk, (batch, seq, d_model), jnp.float32)
    V = jax.random.normal(kv, (batch, seq, d_model), jnp.float32)

    prepped_f32 = prepare_params(params, num_heads, mxu_dtype=jnp.float32)

    out = jax.block_until_ready(multi_head_attention(Q, K, V, prepped_f32))
    ref = reference_mha(Q, K, V, params, num_heads)
    assert out.shape == (batch, seq, d_model)
    assert jnp.allclose(out, ref, atol=1e-4, rtol=1e-4), "cross-attn f32 mismatch"

    out_sa = jax.block_until_ready(multi_head_attention(Q, Q, Q, prepped_f32))
    ref_sa = reference_mha(Q, Q, Q, params, num_heads)
    assert jnp.allclose(out_sa, ref_sa, atol=1e-4, rtol=1e-4), "self-attn f32 mismatch"

    # --- Config B: d_k = 128 (one-head-per-step path + fused packed QKV) ---
    d_model, num_heads, batch, seq = 256, 2, 1, 16
    key, kp, kq = jax.random.split(key, 3)
    params_b = init_params(kp, d_model)
    Qb = jax.random.normal(kq, (batch, seq, d_model), jnp.float32)

    prepped_b_f32 = prepare_params(params_b, num_heads, mxu_dtype=jnp.float32)
    out_b = jax.block_until_ready(multi_head_attention(Qb, Qb, Qb, prepped_b_f32))
    ref_b = reference_mha(Qb, Qb, Qb, params_b, num_heads)
    assert jnp.allclose(out_b, ref_b, atol=1e-4, rtol=1e-4), "fused f32 mismatch"

    # Default bf16 MXU-operand path (f32 accumulation / softmax) — loose check.
    prepped_b_bf16 = prepare_params(params_b, num_heads)   # bf16 default
    out_bf16 = jax.block_until_ready(
        multi_head_attention(Qb, Qb, Qb, prepped_b_bf16))
    assert jnp.all(jnp.isfinite(out_bf16))
    assert float(jnp.max(jnp.abs(out_bf16 - ref_b))) < 0.15, "bf16 path mismatch"

    print("KERNEL_OK")
</pallas_src>

<mosaic_0001>
module attributes {stable_mosaic.version = 11 : i64} {
  func.func @_linear_kernel(%arg0: i32, %arg1: i32, %arg2: i32, %arg3: memref<16x32xf32, #tpu.memory_space<vmem>>, %arg4: memref<32x32xf32, #tpu.memory_space<vmem>>, %arg5: memref<1x32xf32, #tpu.memory_space<vmem>>, %arg6: memref<16x32xf32, #tpu.memory_space<vmem>>, %arg7: memref<16x32xf32, #tpu.memory_space<vmem>>) attributes {dimension_semantics = [#tpu.dimension_semantics<parallel>, #tpu.dimension_semantics<parallel>, #tpu.dimension_semantics<arbitrary>], iteration_bounds = array<i64: 1, 1, 1>, scalar_prefetch = 0 : i64, scratch_operands = 1 : i64, tpu.core_type = #tpu.core_type<tc>, window_params = [{transform_indices = @transform_0, window_bounds = array<i64: 16, 32>}, {transform_indices = @transform_1, window_bounds = array<i64: 32, 32>}, {transform_indices = @transform_2, window_bounds = array<i64: 1, 32>}, {transform_indices = @transform_3, window_bounds = array<i64: 16, 32>}]} {
    %c0_i32 = arith.constant 0 : i32
    %0 = arith.cmpi eq, %arg2, %c0_i32 : i32
    %1 = arith.extui %0 : i1 to i32
    %c0_i32_0 = arith.constant 0 : i32
    %2 = arith.cmpi ne, %1, %c0_i32_0 : i32
    scf.if %2 {
      %cst_10 = arith.constant 0.000000e+00 : f32
      %12 = vector.broadcast %cst_10 : f32 to vector<16x32xf32>
      %c0_11 = arith.constant 0 : index
      %c0_12 = arith.constant 0 : index
      %13 = vector.load %arg7[%c0_11, %c0_12] : memref<16x32xf32, #tpu.memory_space<vmem>>, vector<16x32xf32>
      tpu.vector_store %arg7[%c0_11, %c0_12], %12 {strides = array<i32>} : memref<16x32xf32, #tpu.memory_space<vmem>>, vector<16x32xf32>,
    } else {
    }
    %c0 = arith.constant 0 : index
    %c0_1 = arith.constant 0 : index
    %3 = vector.load %arg7[%c0, %c0_1] : memref<16x32xf32, #tpu.memory_space<vmem>>, vector<16x32xf32>
    %c0_2 = arith.constant 0 : index
    %c0_3 = arith.constant 0 : index
    %4 = vector.load %arg3[%c0_2, %c0_3] : memref<16x32xf32, #tpu.memory_space<vmem>>, vector<16x32xf32>
    %c0_4 = arith.constant 0 : index
    %c0_5 = arith.constant 0 : index
    %5 = vector.load %arg4[%c0_4, %c0_5] : memref<32x32xf32, #tpu.memory_space<vmem>>, vector<32x32xf32>
    %cst = arith.constant dense<0.000000e+00> : vector<16x32xf32>
    %6 = tpu.matmul %4, %5, %cst {dimension_numbers = #tpu.dot_dimension_numbers<[1], [0], [0], [1], [0, 0, 1, 1], [], []>} : vector<16x32xf32>, vector<32x32xf32>, vector<16x32xf32> -> vector<16x32xf32>
    %7 = arith.addf %3, %6 : vector<16x32xf32>
    %c0_6 = arith.constant 0 : index
    %c0_7 = arith.constant 0 : index
    %8 = vector.load %arg7[%c0_6, %c0_7] : memref<16x32xf32, #tpu.memory_space<vmem>>, vector<16x32xf32>
    tpu.vector_store %arg7[%c0_6, %c0_7], %7 {strides = array<i32>} : memref<16x32xf32, #tpu.memory_space<vmem>>, vector<16x32xf32>,
    %c0_i32_8 = arith.constant 0 : i32
    %9 = arith.cmpi eq, %arg2, %c0_i32_8 : i32
    %10 = arith.extui %9 : i1 to i32
    %c0_i32_9 = arith.constant 0 : i32
    %11 = arith.cmpi ne, %10, %c0_i32_9 : i32
    scf.if %11 {
      %c0_10 = arith.constant 0 : index
      %c0_11 = arith.constant 0 : index
      %12 = vector.load %arg7[%c0_10, %c0_11] : memref<16x32xf32, #tpu.memory_space<vmem>>, vector<16x32xf32>
      %c0_12 = arith.constant 0 : index
      %c0_13 = arith.constant 0 : index
      %13 = vector.load %arg5[%c0_12, %c0_13] : memref<1x32xf32, #tpu.memory_space<vmem>>, vector<1x32xf32>
      %14 = vector.broadcast %13 : vector<1x32xf32> to vector<16x32xf32>
      %15 = arith.addf %12, %14 : vector<16x32xf32>
      %c0_14 = arith.constant 0 : index
      %c0_15 = arith.constant 0 : index
      %16 = vector.load %arg6[%c0_14, %c0_15] : memref<16x32xf32, #tpu.memory_space<vmem>>, vector<16x32xf32>
      tpu.vector_store %arg6[%c0_14, %c0_15], %15 {strides = array<i32>} : memref<16x32xf32, #tpu.memory_space<vmem>>, vector<16x32xf32>,
    } else {
    }
    return
  }
  func.func @transform_0(%arg0: i32, %arg1: i32, %arg2: i32) -> (i32, i32) {
    %c0_i32 = arith.constant 0 : i32
    return %arg0, %arg2 : i32, i32
  }
  func.func @transform_1(%arg0: i32, %arg1: i32, %arg2: i32) -> (i32, i32) {
    %c0_i32 = arith.constant 0 : i32
    return %arg2, %arg1 : i32, i32
  }
  func.func @transform_2(%arg0: i32, %arg1: i32, %arg2: i32) -> (i32, i32) {
    %c0_i32 = arith.constant 0 : i32
    %c0_i32_0 = arith.constant 0 : i32
    return %c0_i32, %arg1 : i32, i32
  }
  func.func @transform_3(%arg0: i32, %arg1: i32, %arg2: i32) -> (i32, i32) {
    %c0_i32 = arith.constant 0 : i32
    return %arg0, %arg1 : i32, i32
  }
}

</mosaic_0001>

<llo_original>
// kernel: tpu_custom_call.1
$region0: #{tpu_custom_call.1}
  #allocation0 [shape = 'u32[]', space=smem, size = 0x4, offset = 0x4, fixed_abs, tag = 'smem constant byte address 0x4 - core index']
  #allocation1 [shape = 'u32[72,128]{1,0:T(1,128)}', space=vmem, size = 0x9000, scoped, tag = 'internal scratch']
  #allocation2 [shape = 'f32[16,32]{1,0:T(8,128)}', space=vmem, size = 0x2000, scoped, tag = 'scratch operand']
  %s0 = inlined_call_operand.hbm [shape: f32[16,32], index: 0, kind: input, shape index: {}]
  %s1 = inlined_call_operand.hbm [shape: f32[32,32], index: 1, kind: input, shape index: {}]
  %s2 = inlined_call_operand.vmem [shape: f32[1,32], index: 2, kind: input, shape index: {}]
  %s3 = inlined_call_operand.hbm [shape: f32[16,32], index: 3, kind: output, shape index: {}]
  %s4 = sld [smem:[#allocation0]]
  $region38: #{tpu_custom_call.1} parent=0
    _
  %s6 = ssub.s32 1, %s4
  %s7 = scalar_select 0, %s6, %s4
  $region1: #{tpu_custom_call.1} parent=0
    #allocation3 [shape = 'u8[8192]{0}', space=vmem, size = 0x2000, scoped, tag = 'input window, operand 0, single buffered']
    #allocation4 [shape = 's32[1]{0}', space=sflag, size = 0x4, scoped, tag = 'scoped memory for tpu_custom_call.1']
    #allocation5 [shape = 's32[1]{0}', space=sflag, size = 0x4, scoped, tag = 'scoped memory for tpu_custom_call.1']
    #allocation6 [shape = 'u8[16384]{0}', space=vmem, size = 0x4000, scoped, tag = 'input window, operand 1, single buffered']
    #allocation7 [shape = 's32[1]{0}', space=sflag, size = 0x4, scoped, tag = 'scoped memory for tpu_custom_call.1']
    #allocation8 [shape = 'u8[8192]{0}', space=vmem, size = 0x2000, scoped, tag = 'output window, operand 0, single buffered']
    %8 = vsyncpa [#allocation4], 0
    %9 = vsyncpa [#allocation7], 0
    %10 = vsyncpa [#allocation5], 0
    // Predicated region
    $region2: #{tpu_custom_call.1} parent=1 // pred_check
      _
    $region3: #{tpu_custom_call.1} parent=1 // pred_check_branch
      %12 = sbr.rel (0) target = $region5
    $region4: #{tpu_custom_call.1} parent=1 // pred_region
      %14 = vsyncadd [#allocation4], 0
      %s15 = sshll.u32 %s0, 4
      %s16 = int_to_ptr.hbm [resolvable:$true] %s15
      %s17 = sshll.u32 [#allocation3], 4
      %s18 = int_to_ptr.vmem [resolvable:$true] %s17
      %23 = dma.hbm_to_vmem [thread:$0]  %s16, 256, %s18, [#allocation4], 128, 128, 8
    $region5: #{tpu_custom_call.1} parent=1 // pred_fallthru
      _
    // Predicated region
    $region6: #{tpu_custom_call.1} parent=1 // pred_check
      _
    $region7: #{tpu_custom_call.1} parent=1 // pred_check_branch
      %25 = sbr.rel (0) target = $region9
    $region8: #{tpu_custom_call.1} parent=1 // pred_region
      %27 = vsyncadd [#allocation7], 0
      %s28 = sshll.u32 %s1, 4
      %s29 = int_to_ptr.hbm [resolvable:$true] %s28
      %s30 = sshll.u32 [#allocation6], 4
      %s31 = int_to_ptr.vmem [resolvable:$true] %s30
      %36 = dma.hbm_to_vmem [thread:$0]  %s29, 512, %s31, [#allocation7], 128, 128, 8
    $region9: #{tpu_custom_call.1} parent=1 // pred_fallthru
      _
    // Predicated region
    $region10: #{tpu_custom_call.1} parent=1 // pred_check
      _
    $region11: #{tpu_custom_call.1} parent=1 // pred_check_branch
      %38 = sbr.rel (0) target = $region13
    $region12: #{tpu_custom_call.1} parent=1 // pred_region
      _
    $region13: #{tpu_custom_call.1} parent=1 // pred_fallthru
      _
    // Predicated region
    $region14: #{tpu_custom_call.1} parent=1 // pred_check
      _
    $region15: #{tpu_custom_call.1} parent=1 // pred_check_branch
      %40 = sbr.rel (0) target = $region17
    $region16: #{tpu_custom_call.1} parent=1 // pred_region
      %42 = dma.done [#allocation4], 256
    $region17: #{tpu_custom_call.1} parent=1 // pred_fallthru
      _
    // Predicated region
    $region18: #{tpu_custom_call.1} parent=1 // pred_check
      _
    $region19: #{tpu_custom_call.1} parent=1 // pred_check_branch
      %44 = sbr.rel (0) target = $region21
    $region20: #{tpu_custom_call.1} parent=1 // pred_region
      %46 = dma.done [#allocation7], 512
    $region21: #{tpu_custom_call.1} parent=1 // pred_fallthru
      _
    %p47 = scmp.eq.s32.totalorder 0, 0
    // Predicated region
    $region22: #{tpu_custom_call.1} parent=1 // pred_check
      %p48 = pneg %p47
    $region23: #{tpu_custom_call.1} parent=1 // pred_check_branch
      %50 = sbr.rel (%p48) target = $region25
    $region24: #{tpu_custom_call.1} parent=1 // pred_region
      %vm51 = vcmask 261120
      %52 = vst.msk [vmem:[#allocation2] sm:$0xff] %vm51, 0.0
      %53 = vst.msk [vmem:[#allocation2 + $0x8] sm:$0xff] %vm51, 0.0
    $region25: #{tpu_custom_call.1} parent=1 // pred_fallthru
      _
    %v54 = vld [vmem:[#allocation2] sm:$0xff]
    %v55 = vld [vmem:[#allocation2 + $0x8] sm:$0xff]
    %v56 = vld [vmem:[#allocation3] sm:$0xff]
    %v57 = vld [vmem:[#allocation3 + $0x8] sm:$0xff]
    %v58 = vld [vmem:[#allocation6] sm:$0xff]
    %v59 = vld [vmem:[#allocation6 + $0x8] sm:$0xff]
    %v60 = vld [vmem:[#allocation6 + $0x10] sm:$0xff]
    %v61 = vld [vmem:[#allocation6 + $0x18] sm:$0xff]
    %vm62 = vcmask 261120
    %v64 = vsel %vm62, %v56, 0
    %v67 = vsel %vm62, %v57, 0
    %69 = vmatpush.msra.mxu0 0.0
    %70 = vmatpush.msra.mxu0 0.0
    %71 = vmatpush.msra.mxu0 0.0
    %72 = vmatpush.msra.mxu0 0.0
    %73 = vmatpush.msra.mxu0 0.0
    %74 = vmatpush.msra.mxu0 0.0
    %75 = vmatpush.msra.mxu0 0.0
    %76 = vmatpush.msra.mxu0 0.0
    %77 = vmatpush.msra.mxu0 0.0
    %78 = vmatpush.msra.mxu0 0.0
    %79 = vmatpush.msra.mxu0 0.0
    %80 = vmatpush.msra.mxu0 0.0
    %81 = vmatpush.msra.mxu0 %v61
    %82 = vmatpush.msra.mxu0 %v60
    %83 = vmatpush.msra.mxu0 %v59
    %84 = vmatpush.msra.mxu0 %v58
    %85 = vmatmul.f32.gmra.mxu0 %v64
    %v86 = vpop.f32.mrf.mxu0
    %v87 = vadd.f32 0.0, %v86
    %88 = vmatmul.f32.gmra.mxu0 %v67
    %v89 = vpop.f32.mrf.mxu0
    %v90 = vadd.f32 0.0, %v89
    %91 = vdwg.mxu0
    %v92 = vadd.f32 %v54, %v87
    %v93 = vadd.f32 %v55, %v90
    %94 = vst.msk [vmem:[#allocation2] sm:$0xff] %vm62, %v92
    %95 = vst.msk [vmem:[#allocation2 + $0x8] sm:$0xff] %vm62, %v93
    // Predicated region
    $region26: #{tpu_custom_call.1} parent=1 // pred_check
      %p96 = pneg %p47
    $region27: #{tpu_custom_call.1} parent=1 // pred_check_branch
      %98 = sbr.rel (%p96) target = $region29
    $region28: #{tpu_custom_call.1} parent=1 // pred_region
      %v99 = vld [vmem:[#allocation2] sm:$0xff]
      %v100 = vld [vmem:[#allocation2 + $0x8] sm:$0xff]
      %v101 = vld [vmem:[%s2] sm:$0x1]
      %v103 = vperm.slane %v101, 0
      %v105 = vadd.f32 %v99, %v103
      %v106 = vadd.f32 %v100, %v103
      %107 = vst.msk [vmem:[#allocation8] sm:$0xff] %vm62, %v105
      %108 = vst.msk [vmem:[#allocation8 + $0x8] sm:$0xff] %vm62, %v106
    $region29: #{tpu_custom_call.1} parent=1 // pred_fallthru
      _
    // Predicated region
    $region30: #{tpu_custom_call.1} parent=1 // pred_check
      _
    $region31: #{tpu_custom_call.1} parent=1 // pred_check_branch
      %110 = sbr.rel (0) target = $region33
    $region32: #{tpu_custom_call.1} parent=1 // pred_region
      %112 = vsyncadd [#allocation5], 0
      %s113 = sshll.u32 [#allocation8], 4
      %s114 = int_to_ptr.vmem [resolvable:$true] %s113
      %s115 = sshll.u32 %s3, 4
      %s116 = int_to_ptr.hbm [resolvable:$true] %s115
      %121 = dma.vmem_to_hbm [thread:$0]  %s114, 256, %s116, [#allocation5], 128, 128, 8
    $region33: #{tpu_custom_call.1} parent=1 // pred_fallthru
      _
    // Predicated region
    $region34: #{tpu_custom_call.1} parent=1 // pred_check
      _
    $region35: #{tpu_custom_call.1} parent=1 // pred_check_branch
      %123 = sbr.rel (0) target = $region37
    $region36: #{tpu_custom_call.1} parent=1 // pred_region
      %125 = dma.done [#allocation5], 256
    $region37: #{tpu_custom_call.1} parent=1 // pred_fallthru
      _
    %126 = vsyncpa [#allocation4], 1
    %127 = vsyncpa [#allocation7], 1
    %128 = vsyncpa [#allocation5], 1

</llo_original>
